<compile_context>
chip_gen: v6e
topology: v6e:2x2x1
jax: 0.10.0
libtpu: 0.0.40
codegen_flags: <defaults>
</compile_context>

<pallas_src>
import functools

import numpy as np

import jax
import jax.numpy as jnp
from jax.experimental import pallas as pl
from jax.experimental.pallas import tpu as pltpu


def _round_up(x, m):
    return (x + m - 1) // m * m


def _decoder2_kernel(x_ref, m_ref, w1_ref, w2_ref, aux_ref, o_ref, *,
                     W, c_mid_p, c_out_p):
    """One lane chunk (a group of whole images folded along lanes):
    two fused (3x3 conv -> bias -> ReLU -> BN) stages."""
    lanes = x_ref.shape[-1]
    m = m_ref[...]                                    # (9, 1, lanes) f32

    def im2col(x):
        # x: (Cp, lanes) f32 -> (9*Cp, lanes) bf16 slab for one K=9*Cp matmul.
        # Pieces are cast to bf16 individually; the f32 slab never exists.
        pieces = []
        k = 0
        for kh in range(3):
            for kw in range(3):
                off = (kh - 1) * W + (kw - 1)
                if off == 0:
                    shifted = x
                else:
                    # result[:, p] = x[:, p + off]; taps that wrap across an
                    # image edge (incl. image seams in the folded lane axis)
                    # are zeroed by the precomputed mask.
                    shifted = pltpu.roll(x, shift=(-off) % lanes, axis=1)
                pieces.append((shifted * m[k]).astype(jnp.bfloat16))
                k += 1
        # Cp is a multiple of 16 -> bf16-tile-aligned sublane concatenation.
        return jnp.concatenate(pieces, axis=0)

    def conv_relu_bn(x_col, w_ref, b, g, bb):
        # Single MXU matmul (bf16 x bf16 -> f32 accumulate) + f32 epilogue.
        acc = jnp.dot(w_ref[...], x_col, preferred_element_type=jnp.float32)
        z = jnp.maximum(acc + b, 0.0)                 # conv bias + ReLU
        return z * g + bb                             # folded eval-mode BN

    aux = aux_ref[...]                                # (cp_max, 8) f32
    b1 = aux[0:c_mid_p, 0:1]
    g1 = aux[0:c_mid_p, 1:2]
    bb1 = aux[0:c_mid_p, 2:3]
    b2 = aux[0:c_out_p, 3:4]
    g2 = aux[0:c_out_p, 4:5]
    bb2 = aux[0:c_out_p, 5:6]

    x = x_ref[...]                                                 # (Cp1, lanes)
    y1 = conv_relu_bn(im2col(x), w1_ref, b1, g1, bb1)              # (CpM, lanes)
    # Dropout(p=0.6): identity in eval mode.
    y2 = conv_relu_bn(im2col(y1), w2_ref, b2, g2, bb2)             # (CpO, lanes)
    # Dropout(p=0.6): identity in eval mode.
    o_ref[...] = y2.astype(o_ref.dtype)


def _boundary_masks(H, W):
    """(9, 1, H*W) f32 0/1 masks: which taps fall inside the image."""
    h = np.arange(H)[:, None]
    w = np.arange(W)[None, :]
    masks = np.zeros((9, 1, H * W), np.float32)
    k = 0
    for kh in range(3):
        for kw in range(3):
            dh, dw = kh - 1, kw - 1
            valid = ((h + dh >= 0) & (h + dh < H) &
                     (w + dw >= 0) & (w + dw < W))
            masks[k, 0, :] = valid.astype(np.float32).reshape(-1)
            k += 1
    return jnp.asarray(masks)


def _fold_conv_bn(w_hwio, b, gamma, beta, mean, var, cin_pad, cout_pad,
                  eps=1e-5):
    """Fold conv weights + eval-mode BN into matmul-ready, channel-padded
    tensors: bf16 (cout_pad, 9*cin_pad) weights and f32 (cout_pad,) bias /
    BN scale / BN shift."""
    kh, kw, cin, cout = w_hwio.shape
    w_p = jnp.pad(w_hwio, ((0, 0), (0, 0), (0, cin_pad - cin), (0, 0)))
    w_col = jnp.transpose(w_p.reshape(kh * kw * cin_pad, cout))  # (cout, 9*cin_pad)
    w_col = jnp.pad(w_col, ((0, cout_pad - cout), (0, 0)))

    inv_std = jax.lax.rsqrt(var + eps)
    g_hat = gamma * inv_std
    b_hat = beta - mean * g_hat

    def vec(v):
        return jnp.pad(v.astype(jnp.float32), (0, cout_pad - cout))

    return w_col.astype(jnp.bfloat16), vec(b), vec(g_hat), vec(b_hat)


def decoder_layer2_forward(x_nchw, params, *, lane_chunks=1,
                           out_dtype=jnp.float32, eps=1e-5):
    """Eval-mode forward. x_nchw: (N, 2*Cin, H, W) f32 -> (N, Cout, H, W)."""
    N, C1, H, W = x_nchw.shape
    HW = H * W
    c_mid = params["w1"].shape[-1]
    c_out = params["w2"].shape[-1]

    assert N % lane_chunks == 0, "lane_chunks must divide the batch"
    nb = N // lane_chunks                 # whole images per grid step
    lanes = nb * HW

    # Channels feeding an im2col -> multiple of 16 (bf16-tile-aligned concat);
    # output channels -> multiple of 8 (full-sublane f32 stores).
    c1_p = _round_up(C1, 16)
    c_mid_p = _round_up(c_mid, 16)
    c_out_p = _round_up(c_out, 8)

    # Fold the batch into the lane axis: (N, C, HW) -> (Cp, N*HW).
    x_folded = jnp.transpose(x_nchw.reshape(N, C1, HW), (1, 0, 2))
    x_folded = x_folded.reshape(C1, N * HW)
    if c1_p != C1:
        x_folded = jnp.pad(x_folded, ((0, c1_p - C1), (0, 0)))

    w1, b1, g1, bb1 = _fold_conv_bn(
        params["w1"], params["b1"], params["bn1_gamma"], params["bn1_beta"],
        params["bn1_mean"], params["bn1_var"], c1_p, c_mid_p, eps)
    w2, b2, g2, bb2 = _fold_conv_bn(
        params["w2"], params["b2"], params["bn2_gamma"], params["bn2_beta"],
        params["bn2_mean"], params["bn2_var"], c_mid_p, c_out_p, eps)

    # Pack the six tiny per-channel vectors into one (cp_max, 8) table:
    # one DMA instead of six sub-tile DMAs.
    cp_max = max(c_mid_p, c_out_p)

    def col(v):
        return jnp.pad(v, (0, cp_max - v.shape[0]))

    zeros = jnp.zeros((cp_max,), jnp.float32)
    aux = jnp.stack([col(b1), col(g1), col(bb1),
                     col(b2), col(g2), col(bb2), zeros, zeros], axis=1)

    # Boundary masks for one image, tiled across the images of a lane chunk.
    masks = jnp.tile(_boundary_masks(H, W), (1, 1, nb))          # (9, 1, lanes)

    # Raise the scoped-VMEM limit (clamped) rather than shrinking blocks.
    est = (2 * c1_p * lanes * 4 + 2 * c_out_p * lanes * 4 + 2 * 9 * lanes * 4
           + w1.size * 2 + w2.size * 2 + aux.size * 4
           + 2 * 9 * (c1_p + c_mid_p) * lanes * 2
           + 4 * (c_mid_p + c_out_p) * lanes * 4)
    vmem_limit = int(min(64 * 1024 * 1024, max(32 * 1024 * 1024, 2 * est)))

    kernel = functools.partial(_decoder2_kernel, W=W,
                               c_mid_p=c_mid_p, c_out_p=c_out_p)

    out_folded = pl.pallas_call(
        kernel,
        out_shape=jax.ShapeDtypeStruct((c_out_p, N * HW), out_dtype),
        grid=(lane_chunks,),
        in_specs=[
            pl.BlockSpec((c1_p, lanes), lambda g: (0, g)),
            pl.BlockSpec((9, 1, lanes), lambda g: (0, 0, 0)),
            pl.BlockSpec((c_mid_p, 9 * c1_p), lambda g: (0, 0)),
            pl.BlockSpec((c_out_p, 9 * c_mid_p), lambda g: (0, 0)),
            pl.BlockSpec((cp_max, 8), lambda g: (0, 0)),
        ],
        out_specs=pl.BlockSpec((c_out_p, lanes), lambda g: (0, g)),
        compiler_params=pltpu.CompilerParams(
            dimension_semantics=("parallel",),
            vmem_limit_bytes=vmem_limit),
    )(x_folded, masks, w1, w2, aux)

    out = out_folded[:c_out].astype(jnp.float32)                 # (Cout, N*HW)
    return out.reshape(c_out, N, HW).transpose(1, 0, 2).reshape(N, c_out, H, W)


def _reference_forward(x_nchw, params, eps=1e-5):
    """Pure-JAX (lax.conv, f32) reference for validation."""
    def block(x, w, b, g, beta, mean, var):
        w_oihw = jnp.transpose(w, (3, 2, 0, 1))      # HWIO -> OIHW
        y = jax.lax.conv_general_dilated(
            x, w_oihw, window_strides=(1, 1), padding=((1, 1), (1, 1)),
            dimension_numbers=("NCHW", "OIHW", "NCHW"))
        y = y + b[None, :, None, None]
        y = jnp.maximum(y, 0.0)
        inv_std = 1.0 / jnp.sqrt(var + eps)
        y = (y - mean[None, :, None, None]) * (g * inv_std)[None, :, None, None] \
            + beta[None, :, None, None]
        return y

    y = block(x_nchw, params["w1"], params["b1"], params["bn1_gamma"],
              params["bn1_beta"], params["bn1_mean"], params["bn1_var"])
    y = block(y, params["w2"], params["b2"], params["bn2_gamma"],
              params["bn2_beta"], params["bn2_mean"], params["bn2_var"])
    return y


def init_params(key, in_channels, out_channels):
    c_in1, c_out1 = in_channels * 2, in_channels
    c_in2, c_out2 = in_channels, out_channels
    ks = jax.random.split(key, 8)

    def conv_init(kw_key, kb_key, cin, cout):
        fan_in = cin * 3 * 3
        bound = 1.0 / jnp.sqrt(fan_in)
        w = jax.random.uniform(kw_key, (3, 3, cin, cout), jnp.float32,
                               -bound, bound)
        b = jax.random.uniform(kb_key, (cout,), jnp.float32, -bound, bound)
        return w, b

    w1, b1 = conv_init(ks[0], ks[1], c_in1, c_out1)
    w2, b2 = conv_init(ks[2], ks[3], c_in2, c_out2)

    return {
        "w1": w1, "b1": b1,
        "bn1_gamma": 1.0 + 0.1 * jax.random.normal(ks[4], (c_out1,)),
        "bn1_beta": 0.1 * jax.random.normal(ks[5], (c_out1,)),
        "bn1_mean": 0.05 * jnp.arange(c_out1, dtype=jnp.float32),
        "bn1_var": 1.0 + 0.02 * jnp.arange(c_out1, dtype=jnp.float32),
        "w2": w2, "b2": b2,
        "bn2_gamma": 1.0 + 0.1 * jax.random.normal(ks[6], (c_out2,)),
        "bn2_beta": 0.1 * jax.random.normal(ks[7], (c_out2,)),
        "bn2_mean": -0.05 * jnp.arange(c_out2, dtype=jnp.float32),
        "bn2_var": 1.0 + 0.03 * jnp.arange(c_out2, dtype=jnp.float32),
    }


if __name__ == "__main__":
    in_channels = 4
    out_channels = 4
    N, H, W = 2, 16, 16

    key = jax.random.PRNGKey(0)
    k_x, k_p = jax.random.split(key)
    x = jax.random.normal(k_x, (N, in_channels * 2, H, W), jnp.float32)
    params = init_params(k_p, in_channels, out_channels)

    fwd = jax.jit(functools.partial(decoder_layer2_forward, params=params))
    out = jax.block_until_ready(fwd(x))

    ref = _reference_forward(x, params)
    assert out.shape == (N, out_channels, H, W)
    # bf16 matmul operands (f32 accumulation) vs. a pure-f32 reference.
    max_err = float(jnp.max(jnp.abs(out - ref)))
    assert max_err < 5e-2, f"max abs err {max_err}"

    print("KERNEL_OK")
</pallas_src>

<mosaic_0001>
module attributes {stable_mosaic.version = 11 : i64} {
  func.func @_decoder2_kernel(%arg0: i32, %arg1: memref<16x512xf32, #tpu.memory_space<vmem>>, %arg2: memref<9x1x512xf32, #tpu.memory_space<vmem>>, %arg3: memref<16x144xbf16, #tpu.memory_space<vmem>>, %arg4: memref<8x144xbf16, #tpu.memory_space<vmem>>, %arg5: memref<16x8xf32, #tpu.memory_space<vmem>>, %arg6: memref<8x512xf32, #tpu.memory_space<vmem>>) attributes {dimension_semantics = [#tpu.dimension_semantics<parallel>], iteration_bounds = array<i64: 1>, scalar_prefetch = 0 : i64, scratch_operands = 0 : i64, tpu.core_type = #tpu.core_type<tc>, window_params = [{transform_indices = @transform_0, window_bounds = array<i64: 16, 512>}, {pipeline_mode = #tpu.pipeline_mode<synchronous>, transform_indices = @transform_1, window_bounds = array<i64: 9, 1, 512>}, {pipeline_mode = #tpu.pipeline_mode<synchronous>, transform_indices = @transform_2, window_bounds = array<i64: 16, 144>}, {pipeline_mode = #tpu.pipeline_mode<synchronous>, transform_indices = @transform_3, window_bounds = array<i64: 8, 144>}, {pipeline_mode = #tpu.pipeline_mode<synchronous>, transform_indices = @transform_4, window_bounds = array<i64: 16, 8>}, {transform_indices = @transform_5, window_bounds = array<i64: 8, 512>}]} {
    %c0 = arith.constant 0 : index
    %c0_0 = arith.constant 0 : index
    %c0_1 = arith.constant 0 : index
    %0 = vector.load %arg2[%c0, %c0_0, %c0_1] : memref<9x1x512xf32, #tpu.memory_space<vmem>>, vector<9x1x512xf32>
    %c0_2 = arith.constant 0 : index
    %c0_3 = arith.constant 0 : index
    %1 = vector.load %arg5[%c0_2, %c0_3] : memref<16x8xf32, #tpu.memory_space<vmem>>, vector<16x8xf32>
    %2 = vector.extract_strided_slice %1 {offsets = [0, 0], sizes = [16, 1], strides = [1, 1]} : vector<16x8xf32> to vector<16x1xf32>
    %3 = vector.extract_strided_slice %1 {offsets = [0, 1], sizes = [16, 1], strides = [1, 1]} : vector<16x8xf32> to vector<16x1xf32>
    %4 = vector.extract_strided_slice %1 {offsets = [0, 2], sizes = [16, 1], strides = [1, 1]} : vector<16x8xf32> to vector<16x1xf32>
    %5 = vector.extract_strided_slice %1 {offsets = [0, 3], sizes = [8, 1], strides = [1, 1]} : vector<16x8xf32> to vector<8x1xf32>
    %6 = vector.extract_strided_slice %1 {offsets = [0, 4], sizes = [8, 1], strides = [1, 1]} : vector<16x8xf32> to vector<8x1xf32>
    %7 = vector.extract_strided_slice %1 {offsets = [0, 5], sizes = [8, 1], strides = [1, 1]} : vector<16x8xf32> to vector<8x1xf32>
    %c0_4 = arith.constant 0 : index
    %c0_5 = arith.constant 0 : index
    %8 = vector.load %arg1[%c0_4, %c0_5] : memref<16x512xf32, #tpu.memory_space<vmem>>, vector<16x512xf32>
    %c17_i32 = arith.constant 17 : i32
    %9 = tpu.dynamic_rotate %8 by %c17_i32 dim 1 : vector<16x512xf32>, i32 -> vector<16x512xf32>
    %10 = vector.extract_strided_slice %0 {offsets = [0, 0, 0], sizes = [1, 1, 512], strides = [1, 1, 1]} : vector<9x1x512xf32> to vector<1x1x512xf32>
    %11 = vector.shape_cast %10 : vector<1x1x512xf32> to vector<1x512xf32>
    %12 = vector.broadcast %11 : vector<1x512xf32> to vector<16x512xf32>
    %13 = arith.mulf %9, %12 : vector<16x512xf32>
    %14 = arith.truncf %13 : vector<16x512xf32> to vector<16x512xbf16>
    %c16_i32 = arith.constant 16 : i32
    %15 = tpu.dynamic_rotate %8 by %c16_i32 dim 1 : vector<16x512xf32>, i32 -> vector<16x512xf32>
    %16 = vector.extract_strided_slice %0 {offsets = [1, 0, 0], sizes = [1, 1, 512], strides = [1, 1, 1]} : vector<9x1x512xf32> to vector<1x1x512xf32>
    %17 = vector.shape_cast %16 : vector<1x1x512xf32> to vector<1x512xf32>
    %18 = vector.broadcast %17 : vector<1x512xf32> to vector<16x512xf32>
    %19 = arith.mulf %15, %18 : vector<16x512xf32>
    %20 = arith.truncf %19 : vector<16x512xf32> to vector<16x512xbf16>
    %c15_i32 = arith.constant 15 : i32
    %21 = tpu.dynamic_rotate %8 by %c15_i32 dim 1 : vector<16x512xf32>, i32 -> vector<16x512xf32>
    %22 = vector.extract_strided_slice %0 {offsets = [2, 0, 0], sizes = [1, 1, 512], strides = [1, 1, 1]} : vector<9x1x512xf32> to vector<1x1x512xf32>
    %23 = vector.shape_cast %22 : vector<1x1x512xf32> to vector<1x512xf32>
    %24 = vector.broadcast %23 : vector<1x512xf32> to vector<16x512xf32>
    %25 = arith.mulf %21, %24 : vector<16x512xf32>
    %26 = arith.truncf %25 : vector<16x512xf32> to vector<16x512xbf16>
    %c1_i32 = arith.constant 1 : i32
    %27 = tpu.dynamic_rotate %8 by %c1_i32 dim 1 : vector<16x512xf32>, i32 -> vector<16x512xf32>
    %28 = vector.extract_strided_slice %0 {offsets = [3, 0, 0], sizes = [1, 1, 512], strides = [1, 1, 1]} : vector<9x1x512xf32> to vector<1x1x512xf32>
    %29 = vector.shape_cast %28 : vector<1x1x512xf32> to vector<1x512xf32>
    %30 = vector.broadcast %29 : vector<1x512xf32> to vector<16x512xf32>
    %31 = arith.mulf %27, %30 : vector<16x512xf32>
    %32 = arith.truncf %31 : vector<16x512xf32> to vector<16x512xbf16>
    %33 = vector.extract_strided_slice %0 {offsets = [4, 0, 0], sizes = [1, 1, 512], strides = [1, 1, 1]} : vector<9x1x512xf32> to vector<1x1x512xf32>
    %34 = vector.shape_cast %33 : vector<1x1x512xf32> to vector<1x512xf32>
    %35 = vector.broadcast %34 : vector<1x512xf32> to vector<16x512xf32>
    %36 = arith.mulf %8, %35 : vector<16x512xf32>
    %37 = arith.truncf %36 : vector<16x512xf32> to vector<16x512xbf16>
    %c511_i32 = arith.constant 511 : i32
    %38 = tpu.dynamic_rotate %8 by %c511_i32 dim 1 : vector<16x512xf32>, i32 -> vector<16x512xf32>
    %39 = vector.extract_strided_slice %0 {offsets = [5, 0, 0], sizes = [1, 1, 512], strides = [1, 1, 1]} : vector<9x1x512xf32> to vector<1x1x512xf32>
    %40 = vector.shape_cast %39 : vector<1x1x512xf32> to vector<1x512xf32>
    %41 = vector.broadcast %40 : vector<1x512xf32> to vector<16x512xf32>
    %42 = arith.mulf %38, %41 : vector<16x512xf32>
    %43 = arith.truncf %42 : vector<16x512xf32> to vector<16x512xbf16>
    %c497_i32 = arith.constant 497 : i32
    %44 = tpu.dynamic_rotate %8 by %c497_i32 dim 1 : vector<16x512xf32>, i32 -> vector<16x512xf32>
    %45 = vector.extract_strided_slice %0 {offsets = [6, 0, 0], sizes = [1, 1, 512], strides = [1, 1, 1]} : vector<9x1x512xf32> to vector<1x1x512xf32>
    %46 = vector.shape_cast %45 : vector<1x1x512xf32> to vector<1x512xf32>
    %47 = vector.broadcast %46 : vector<1x512xf32> to vector<16x512xf32>
    %48 = arith.mulf %44, %47 : vector<16x512xf32>
    %49 = arith.truncf %48 : vector<16x512xf32> to vector<16x512xbf16>
    %c496_i32 = arith.constant 496 : i32
    %50 = tpu.dynamic_rotate %8 by %c496_i32 dim 1 : vector<16x512xf32>, i32 -> vector<16x512xf32>
    %51 = vector.extract_strided_slice %0 {offsets = [7, 0, 0], sizes = [1, 1, 512], strides = [1, 1, 1]} : vector<9x1x512xf32> to vector<1x1x512xf32>
    %52 = vector.shape_cast %51 : vector<1x1x512xf32> to vector<1x512xf32>
    %53 = vector.broadcast %52 : vector<1x512xf32> to vector<16x512xf32>
    %54 = arith.mulf %50, %53 : vector<16x512xf32>
    %55 = arith.truncf %54 : vector<16x512xf32> to vector<16x512xbf16>
    %c495_i32 = arith.constant 495 : i32
    %56 = tpu.dynamic_rotate %8 by %c495_i32 dim 1 : vector<16x512xf32>, i32 -> vector<16x512xf32>
    %57 = vector.extract_strided_slice %0 {offsets = [8, 0, 0], sizes = [1, 1, 512], strides = [1, 1, 1]} : vector<9x1x512xf32> to vector<1x1x512xf32>
    %58 = vector.shape_cast %57 : vector<1x1x512xf32> to vector<1x512xf32>
    %59 = vector.broadcast %58 : vector<1x512xf32> to vector<16x512xf32>
    %60 = arith.mulf %56, %59 : vector<16x512xf32>
    %61 = arith.truncf %60 : vector<16x512xf32> to vector<16x512xbf16>
    %62 = tpu.concatenate %14, %20, %26, %32, %37, %43, %49, %55, %61 in 0 : vector<16x512xbf16>, vector<16x512xbf16>, vector<16x512xbf16>, vector<16x512xbf16>, vector<16x512xbf16>, vector<16x512xbf16>, vector<16x512xbf16>, vector<16x512xbf16>, vector<16x512xbf16> -> vector<144x512xbf16>
    %c0_6 = arith.constant 0 : index
    %c0_7 = arith.constant 0 : index
    %63 = vector.load %arg3[%c0_6, %c0_7] : memref<16x144xbf16, #tpu.memory_space<vmem>>, vector<16x144xbf16>
    %cst = arith.constant dense<0.000000e+00> : vector<16x512xf32>
    %64 = tpu.matmul %63, %62, %cst {dimension_numbers = #tpu.dot_dimension_numbers<[1], [0], [0], [1], [0, 0, 1, 1], [], []>} : vector<16x144xbf16>, vector<144x512xbf16>, vector<16x512xf32> -> vector<16x512xf32>
    %65 = vector.broadcast %2 : vector<16x1xf32> to vector<16x512xf32>
    %66 = arith.addf %64, %65 : vector<16x512xf32>
    %cst_8 = arith.constant 0.000000e+00 : f32
    %67 = vector.broadcast %cst_8 : f32 to vector<16x512xf32>
    %68 = arith.maximumf %66, %67 : vector<16x512xf32>
    %69 = vector.broadcast %3 : vector<16x1xf32> to vector<16x512xf32>
    %70 = arith.mulf %68, %69 : vector<16x512xf32>
    %71 = vector.broadcast %4 : vector<16x1xf32> to vector<16x512xf32>
    %72 = arith.addf %70, %71 : vector<16x512xf32>
    %c17_i32_9 = arith.constant 17 : i32
    %73 = tpu.dynamic_rotate %72 by %c17_i32_9 dim 1 : vector<16x512xf32>, i32 -> vector<16x512xf32>
    %74 = vector.extract_strided_slice %0 {offsets = [0, 0, 0], sizes = [1, 1, 512], strides = [1, 1, 1]} : vector<9x1x512xf32> to vector<1x1x512xf32>
    %75 = vector.shape_cast %74 : vector<1x1x512xf32> to vector<1x512xf32>
    %76 = vector.broadcast %75 : vector<1x512xf32> to vector<16x512xf32>
    %77 = arith.mulf %73, %76 : vector<16x512xf32>
    %78 = arith.truncf %77 : vector<16x512xf32> to vector<16x512xbf16>
    %c16_i32_10 = arith.constant 16 : i32
    %79 = tpu.dynamic_rotate %72 by %c16_i32_10 dim 1 : vector<16x512xf32>, i32 -> vector<16x512xf32>
    %80 = vector.extract_strided_slice %0 {offsets = [1, 0, 0], sizes = [1, 1, 512], strides = [1, 1, 1]} : vector<9x1x512xf32> to vector<1x1x512xf32>
    %81 = vector.shape_cast %80 : vector<1x1x512xf32> to vector<1x512xf32>
    %82 = vector.broadcast %81 : vector<1x512xf32> to vector<16x512xf32>
    %83 = arith.mulf %79, %82 : vector<16x512xf32>
    %84 = arith.truncf %83 : vector<16x512xf32> to vector<16x512xbf16>
    %c15_i32_11 = arith.constant 15 : i32
    %85 = tpu.dynamic_rotate %72 by %c15_i32_11 dim 1 : vector<16x512xf32>, i32 -> vector<16x512xf32>
    %86 = vector.extract_strided_slice %0 {offsets = [2, 0, 0], sizes = [1, 1, 512], strides = [1, 1, 1]} : vector<9x1x512xf32> to vector<1x1x512xf32>
    %87 = vector.shape_cast %86 : vector<1x1x512xf32> to vector<1x512xf32>
    %88 = vector.broadcast %87 : vector<1x512xf32> to vector<16x512xf32>
    %89 = arith.mulf %85, %88 : vector<16x512xf32>
    %90 = arith.truncf %89 : vector<16x512xf32> to vector<16x512xbf16>
    %c1_i32_12 = arith.constant 1 : i32
    %91 = tpu.dynamic_rotate %72 by %c1_i32_12 dim 1 : vector<16x512xf32>, i32 -> vector<16x512xf32>
    %92 = vector.extract_strided_slice %0 {offsets = [3, 0, 0], sizes = [1, 1, 512], strides = [1, 1, 1]} : vector<9x1x512xf32> to vector<1x1x512xf32>
    %93 = vector.shape_cast %92 : vector<1x1x512xf32> to vector<1x512xf32>
    %94 = vector.broadcast %93 : vector<1x512xf32> to vector<16x512xf32>
    %95 = arith.mulf %91, %94 : vector<16x512xf32>
    %96 = arith.truncf %95 : vector<16x512xf32> to vector<16x512xbf16>
    %97 = vector.extract_strided_slice %0 {offsets = [4, 0, 0], sizes = [1, 1, 512], strides = [1, 1, 1]} : vector<9x1x512xf32> to vector<1x1x512xf32>
    %98 = vector.shape_cast %97 : vector<1x1x512xf32> to vector<1x512xf32>
    %99 = vector.broadcast %98 : vector<1x512xf32> to vector<16x512xf32>
    %100 = arith.mulf %72, %99 : vector<16x512xf32>
    %101 = arith.truncf %100 : vector<16x512xf32> to vector<16x512xbf16>
    %c511_i32_13 = arith.constant 511 : i32
    %102 = tpu.dynamic_rotate %72 by %c511_i32_13 dim 1 : vector<16x512xf32>, i32 -> vector<16x512xf32>
    %103 = vector.extract_strided_slice %0 {offsets = [5, 0, 0], sizes = [1, 1, 512], strides = [1, 1, 1]} : vector<9x1x512xf32> to vector<1x1x512xf32>
    %104 = vector.shape_cast %103 : vector<1x1x512xf32> to vector<1x512xf32>
    %105 = vector.broadcast %104 : vector<1x512xf32> to vector<16x512xf32>
    %106 = arith.mulf %102, %105 : vector<16x512xf32>
    %107 = arith.truncf %106 : vector<16x512xf32> to vector<16x512xbf16>
    %c497_i32_14 = arith.constant 497 : i32
    %108 = tpu.dynamic_rotate %72 by %c497_i32_14 dim 1 : vector<16x512xf32>, i32 -> vector<16x512xf32>
    %109 = vector.extract_strided_slice %0 {offsets = [6, 0, 0], sizes = [1, 1, 512], strides = [1, 1, 1]} : vector<9x1x512xf32> to vector<1x1x512xf32>
    %110 = vector.shape_cast %109 : vector<1x1x512xf32> to vector<1x512xf32>
    %111 = vector.broadcast %110 : vector<1x512xf32> to vector<16x512xf32>
    %112 = arith.mulf %108, %111 : vector<16x512xf32>
    %113 = arith.truncf %112 : vector<16x512xf32> to vector<16x512xbf16>
    %c496_i32_15 = arith.constant 496 : i32
    %114 = tpu.dynamic_rotate %72 by %c496_i32_15 dim 1 : vector<16x512xf32>, i32 -> vector<16x512xf32>
    %115 = vector.extract_strided_slice %0 {offsets = [7, 0, 0], sizes = [1, 1, 512], strides = [1, 1, 1]} : vector<9x1x512xf32> to vector<1x1x512xf32>
    %116 = vector.shape_cast %115 : vector<1x1x512xf32> to vector<1x512xf32>
    %117 = vector.broadcast %116 : vector<1x512xf32> to vector<16x512xf32>
    %118 = arith.mulf %114, %117 : vector<16x512xf32>
    %119 = arith.truncf %118 : vector<16x512xf32> to vector<16x512xbf16>
    %c495_i32_16 = arith.constant 495 : i32
    %120 = tpu.dynamic_rotate %72 by %c495_i32_16 dim 1 : vector<16x512xf32>, i32 -> vector<16x512xf32>
    %121 = vector.extract_strided_slice %0 {offsets = [8, 0, 0], sizes = [1, 1, 512], strides = [1, 1, 1]} : vector<9x1x512xf32> to vector<1x1x512xf32>
    %122 = vector.shape_cast %121 : vector<1x1x512xf32> to vector<1x512xf32>
    %123 = vector.broadcast %122 : vector<1x512xf32> to vector<16x512xf32>
    %124 = arith.mulf %120, %123 : vector<16x512xf32>
    %125 = arith.truncf %124 : vector<16x512xf32> to vector<16x512xbf16>
    %126 = tpu.concatenate %78, %84, %90, %96, %101, %107, %113, %119, %125 in 0 : vector<16x512xbf16>, vector<16x512xbf16>, vector<16x512xbf16>, vector<16x512xbf16>, vector<16x512xbf16>, vector<16x512xbf16>, vector<16x512xbf16>, vector<16x512xbf16>, vector<16x512xbf16> -> vector<144x512xbf16>
    %c0_17 = arith.constant 0 : index
    %c0_18 = arith.constant 0 : index
    %127 = vector.load %arg4[%c0_17, %c0_18] : memref<8x144xbf16, #tpu.memory_space<vmem>>, vector<8x144xbf16>
    %cst_19 = arith.constant dense<0.000000e+00> : vector<8x512xf32>
    %128 = tpu.matmul %127, %126, %cst_19 {dimension_numbers = #tpu.dot_dimension_numbers<[1], [0], [0], [1], [0, 0, 1, 1], [], []>} : vector<8x144xbf16>, vector<144x512xbf16>, vector<8x512xf32> -> vector<8x512xf32>
    %129 = vector.broadcast %5 : vector<8x1xf32> to vector<8x512xf32>
    %130 = arith.addf %128, %129 : vector<8x512xf32>
    %cst_20 = arith.constant 0.000000e+00 : f32
    %131 = vector.broadcast %cst_20 : f32 to vector<8x512xf32>
    %132 = arith.maximumf %130, %131 : vector<8x512xf32>
    %133 = vector.broadcast %6 : vector<8x1xf32> to vector<8x512xf32>
    %134 = arith.mulf %132, %133 : vector<8x512xf32>
    %135 = vector.broadcast %7 : vector<8x1xf32> to vector<8x512xf32>
    %136 = arith.addf %134, %135 : vector<8x512xf32>
    %c0_21 = arith.constant 0 : index
    %c0_22 = arith.constant 0 : index
    %137 = vector.load %arg6[%c0_21, %c0_22] : memref<8x512xf32, #tpu.memory_space<vmem>>, vector<8x512xf32>
    tpu.vector_store %arg6[%c0_21, %c0_22], %136 {strides = array<i32>} : memref<8x512xf32, #tpu.memory_space<vmem>>, vector<8x512xf32>,
    return
  }
  func.func @transform_0(%arg0: i32) -> (i32, i32) {
    %c0_i32 = arith.constant 0 : i32
    %c0_i32_0 = arith.constant 0 : i32
    return %c0_i32, %arg0 : i32, i32
  }
  func.func @transform_1(%arg0: i32) -> (i32, i32, i32) {
    %c0_i32 = arith.constant 0 : i32
    %c0_i32_0 = arith.constant 0 : i32
    %c0_i32_1 = arith.constant 0 : i32
    %c0_i32_2 = arith.constant 0 : i32
    return %c0_i32, %c0_i32_0, %c0_i32_1 : i32, i32, i32
  }
  func.func @transform_2(%arg0: i32) -> (i32, i32) {
    %c0_i32 = arith.constant 0 : i32
    %c0_i32_0 = arith.constant 0 : i32
    %c0_i32_1 = arith.constant 0 : i32
    return %c0_i32, %c0_i32_0 : i32, i32
  }
  func.func @transform_3(%arg0: i32) -> (i32, i32) {
    %c0_i32 = arith.constant 0 : i32
    %c0_i32_0 = arith.constant 0 : i32
    %c0_i32_1 = arith.constant 0 : i32
    return %c0_i32, %c0_i32_0 : i32, i32
  }
  func.func @transform_4(%arg0: i32) -> (i32, i32) {
    %c0_i32 = arith.constant 0 : i32
    %c0_i32_0 = arith.constant 0 : i32
    %c0_i32_1 = arith.constant 0 : i32
    return %c0_i32, %c0_i32_0 : i32, i32
  }
  func.func @transform_5(%arg0: i32) -> (i32, i32) {
    %c0_i32 = arith.constant 0 : i32
    %c0_i32_0 = arith.constant 0 : i32
    return %c0_i32, %arg0 : i32, i32
  }
}

</mosaic_0001>

<llo_original>
// kernel: decoder_layer2_forward.1
$region0: #{decoder_layer2_forward.1}
  #allocation0 [shape = 'u32[]', space=smem, size = 0x4, offset = 0x4, fixed_abs, tag = 'smem constant byte address 0x4 - core index']
  #allocation1 [shape = 'u32[144,128]{1,0:T(1,128)}', space=vmem, size = 0x12000, scoped, tag = 'internal scratch']
  %s0 = inlined_call_operand.vmem [shape: f32[16,512], index: 0, kind: input, shape index: {}]
  %s1 = inlined_call_operand.vmem [shape: f32[9,1,512], index: 1, kind: input, shape index: {}]
  %s2 = inlined_call_operand.vmem [shape: bf16[16,144], index: 2, kind: input, shape index: {}]
  %s3 = inlined_call_operand.vmem [shape: bf16[8,144], index: 3, kind: input, shape index: {}]
  %s4 = inlined_call_operand.vmem [shape: f32[16,8], index: 4, kind: input, shape index: {}]
  %s5 = inlined_call_operand.vmem [shape: f32[8,512], index: 5, kind: output, shape index: {}]
  %s6 = sld [smem:[#allocation0]]
  $region30: #{decoder_layer2_forward.1} parent=0
    _
  %s8 = ssub.s32 1, %s6
  %s9 = scalar_select 0, %s8, %s6
  // Predicated region
  $region2: #{decoder_layer2_forward.1} parent=0 // pred_check
    _
  $region3: #{decoder_layer2_forward.1} parent=0 // pred_check_branch
    %11 = sbr.rel (0) target = $region5
  $region4: #{decoder_layer2_forward.1} parent=0 // pred_region
    _
  $region5: #{decoder_layer2_forward.1} parent=0 // pred_fallthru
    _
  // Predicated region
  $region6: #{decoder_layer2_forward.1} parent=0 // pred_check
    _
  $region7: #{decoder_layer2_forward.1} parent=0 // pred_check_branch
    %13 = sbr.rel (0) target = $region9
  $region8: #{decoder_layer2_forward.1} parent=0 // pred_region
    _
  $region9: #{decoder_layer2_forward.1} parent=0 // pred_fallthru
    _
  // Predicated region
  $region10: #{decoder_layer2_forward.1} parent=0 // pred_check
    _
  $region11: #{decoder_layer2_forward.1} parent=0 // pred_check_branch
    %15 = sbr.rel (0) target = $region13
  $region12: #{decoder_layer2_forward.1} parent=0 // pred_region
    _
  $region13: #{decoder_layer2_forward.1} parent=0 // pred_fallthru
    _
  // Predicated region
  $region14: #{decoder_layer2_forward.1} parent=0 // pred_check
    _
  $region15: #{decoder_layer2_forward.1} parent=0 // pred_check_branch
    %17 = sbr.rel (0) target = $region17
  $region16: #{decoder_layer2_forward.1} parent=0 // pred_region
    _
  $region17: #{decoder_layer2_forward.1} parent=0 // pred_fallthru
    _
  // Predicated region
  $region18: #{decoder_layer2_forward.1} parent=0 // pred_check
    _
  $region19: #{decoder_layer2_forward.1} parent=0 // pred_check_branch
    %19 = sbr.rel (0) target = $region21
  $region20: #{decoder_layer2_forward.1} parent=0 // pred_region
    _
  $region21: #{decoder_layer2_forward.1} parent=0 // pred_fallthru
    _
  %v21 = vld [vmem:[%s1] sm:$0xf]
  %v22 = vld [vmem:[%s1 + $0x4] sm:$0xf]
  %v23 = vld [vmem:[%s1 + $0x8] sm:$0xf]
  %v24 = vld [vmem:[%s1 + $0xc] sm:$0xf]
  %v25 = vld [vmem:[%s1 + $0x10] sm:$0xf]
  %v26 = vld [vmem:[%s1 + $0x14] sm:$0xf]
  %v27 = vld [vmem:[%s1 + $0x18] sm:$0xf]
  %v28 = vld [vmem:[%s1 + $0x1c] sm:$0xf]
  %v29 = vld [vmem:[%s1 + $0x20] sm:$0xf]
  %v30 = vld [vmem:[%s4] sm:$0xff]
  %v31 = vld [vmem:[%s4 + $0x8] sm:$0xff]
  %v32 = vld [vmem:[%s0] sm:$0xff]
  %v33 = vld [vmem:[%s0 + $0x8] sm:$0xff]
  %v34 = vld [vmem:[%s0 + $0x10] sm:$0xff]
  %v35 = vld [vmem:[%s0 + $0x18] sm:$0xff]
  %v36 = vld [vmem:[%s0 + $0x20] sm:$0xff]
  %v37 = vld [vmem:[%s0 + $0x28] sm:$0xff]
  %v38 = vld [vmem:[%s0 + $0x30] sm:$0xff]
  %v39 = vld [vmem:[%s0 + $0x38] sm:$0xff]
  %40 = vrot.lane.b32.xlu0 %v32, 17
  %v41 = vpop.permute.xlu0 %40
  %42 = vrot.lane.b32.xlu0 %v36, 17
  %v43 = vpop.permute.xlu0 %42
  %44 = vrot.lane.b32.xlu0 %v33, 17
  %v45 = vpop.permute.xlu0 %44
  %46 = vrot.lane.b32.xlu0 %v37, 17
  %v47 = vpop.permute.xlu0 %46
  %48 = vrot.lane.b32.xlu0 %v34, 17
  %v49 = vpop.permute.xlu0 %48
  %50 = vrot.lane.b32.xlu0 %v38, 17
  %v51 = vpop.permute.xlu0 %50
  %52 = vrot.lane.b32.xlu0 %v35, 17
  %v53 = vpop.permute.xlu0 %52
  %54 = vrot.lane.b32.xlu0 %v39, 17
  %v55 = vpop.permute.xlu0 %54
  %v56 = vlaneseq
  %v57 = vand.u32 %v56, 127
  %vm58 = vcmp.lt.s32.totalorder %v57, 17
  %v59 = vsel %vm58, %v49, %v53
  %v60 = vsel %vm58, %v51, %v55
  %v61 = vsel %vm58, %v45, %v49
  %v62 = vsel %vm58, %v47, %v51
  %v63 = vsel %vm58, %v41, %v45
  %v64 = vsel %vm58, %v43, %v47
  %v65 = vsel %vm58, %v53, %v41
  %v66 = vsel %vm58, %v55, %v43
  %v68 = vlaneseq
  %v69 = vshrl.u32 %v68, 7
  %v70 = vsub.s32 0, %v69
  %v71 = vrot.slane %v21, %v70
  %v72 = vlaneseq
  %v73 = vshrl.u32 %v72, 7
  %v74 = vsub.s32 1, %v73
  %v75 = vrot.slane %v21, %v74
  %v76 = vlaneseq
  %v77 = vshrl.u32 %v76, 7
  %v78 = vsub.s32 2, %v77
  %v79 = vrot.slane %v21, %v78
  %v80 = vlaneseq
  %v81 = vshrl.u32 %v80, 7
  %v82 = vsub.s32 3, %v81
  %v83 = vrot.slane %v21, %v82
  %v88 = vmul.f32 %v65, %v71
  %v89 = vmul.f32 %v63, %v75
  %v90 = vmul.f32 %v61, %v79
  %v91 = vmul.f32 %v59, %v83
  %v92 = vmul.f32 %v66, %v71
  %v93 = vmul.f32 %v64, %v75
  %v94 = vmul.f32 %v62, %v79
  %v95 = vmul.f32 %v60, %v83
  %v96 = vpack.c.bf16 %v92, %v88
  %v97 = vpack.c.bf16 %v93, %v89
  %v98 = vpack.c.bf16 %v94, %v90
  %v99 = vpack.c.bf16 %v95, %v91
  %100 = vrot.lane.b32.xlu0 %v32, 16
  %v101 = vpop.permute.xlu0 %100
  %102 = vrot.lane.b32.xlu0 %v36, 16
  %v103 = vpop.permute.xlu0 %102
  %104 = vrot.lane.b32.xlu0 %v33, 16
  %v105 = vpop.permute.xlu0 %104
  %106 = vrot.lane.b32.xlu0 %v37, 16
  %v107 = vpop.permute.xlu0 %106
  %108 = vrot.lane.b32.xlu0 %v34, 16
  %v109 = vpop.permute.xlu0 %108
  %110 = vrot.lane.b32.xlu0 %v38, 16
  %v111 = vpop.permute.xlu0 %110
  %112 = vrot.lane.b32.xlu0 %v35, 16
  %v113 = vpop.permute.xlu0 %112
  %114 = vrot.lane.b32.xlu0 %v39, 16
  %v115 = vpop.permute.xlu0 %114
  %vm116 = vcmp.lt.s32.totalorder %v57, 16
  %v117 = vsel %vm116, %v109, %v113
  %v118 = vsel %vm116, %v111, %v115
  %v119 = vsel %vm116, %v105, %v109
  %v120 = vsel %vm116, %v107, %v111
  %v121 = vsel %vm116, %v101, %v105
  %v122 = vsel %vm116, %v103, %v107
  %v123 = vsel %vm116, %v113, %v101
  %v124 = vsel %vm116, %v115, %v103
  %v126 = vlaneseq
  %v127 = vshrl.u32 %v126, 7
  %v128 = vsub.s32 0, %v127
  %v129 = vrot.slane %v22, %v128
  %v130 = vlaneseq
  %v131 = vshrl.u32 %v130, 7
  %v132 = vsub.s32 1, %v131
  %v133 = vrot.slane %v22, %v132
  %v134 = vlaneseq
  %v135 = vshrl.u32 %v134, 7
  %v136 = vsub.s32 2, %v135
  %v137 = vrot.slane %v22, %v136
  %v138 = vlaneseq
  %v139 = vshrl.u32 %v138, 7
  %v140 = vsub.s32 3, %v139
  %v141 = vrot.slane %v22, %v140
  %v146 = vmul.f32 %v123, %v129
  %v147 = vmul.f32 %v121, %v133
  %v148 = vmul.f32 %v119, %v137
  %v149 = vmul.f32 %v117, %v141
  %v150 = vmul.f32 %v124, %v129
  %v151 = vmul.f32 %v122, %v133
  %v152 = vmul.f32 %v120, %v137
  %v153 = vmul.f32 %v118, %v141
  %v154 = vpack.c.bf16 %v150, %v146
  %v155 = vpack.c.bf16 %v151, %v147
  %v156 = vpack.c.bf16 %v152, %v148
  %v157 = vpack.c.bf16 %v153, %v149
  %158 = vrot.lane.b32.xlu0 %v32, 15
  %v159 = vpop.permute.xlu0 %158
  %160 = vrot.lane.b32.xlu0 %v36, 15
  %v161 = vpop.permute.xlu0 %160
  %162 = vrot.lane.b32.xlu0 %v33, 15
  %v163 = vpop.permute.xlu0 %162
  %164 = vrot.lane.b32.xlu0 %v37, 15
  %v165 = vpop.permute.xlu0 %164
  %166 = vrot.lane.b32.xlu0 %v34, 15
  %v167 = vpop.permute.xlu0 %166
  %168 = vrot.lane.b32.xlu0 %v38, 15
  %v169 = vpop.permute.xlu0 %168
  %170 = vrot.lane.b32.xlu0 %v35, 15
  %v171 = vpop.permute.xlu0 %170
  %172 = vrot.lane.b32.xlu0 %v39, 15
  %v173 = vpop.permute.xlu0 %172
  %vm174 = vcmp.lt.s32.totalorder %v57, 15
  %v175 = vsel %vm174, %v167, %v171
  %v176 = vsel %vm174, %v169, %v173
  %v177 = vsel %vm174, %v163, %v167
  %v178 = vsel %vm174, %v165, %v169
  %v179 = vsel %vm174, %v159, %v163
  %v180 = vsel %vm174, %v161, %v165
  %v181 = vsel %vm174, %v171, %v159
  %v182 = vsel %vm174, %v173, %v161
  %v184 = vlaneseq
  %v185 = vshrl.u32 %v184, 7
  %v186 = vsub.s32 0, %v185
  %v187 = vrot.slane %v23, %v186
  %v188 = vlaneseq
  %v189 = vshrl.u32 %v188, 7
  %v190 = vsub.s32 1, %v189
  %v191 = vrot.slane %v23, %v190
  %v192 = vlaneseq
  %v193 = vshrl.u32 %v192, 7
  %v194 = vsub.s32 2, %v193
  %v195 = vrot.slane %v23, %v194
  %v196 = vlaneseq
  %v197 = vshrl.u32 %v196, 7
  %v198 = vsub.s32 3, %v197
  %v199 = vrot.slane %v23, %v198
  %v204 = vmul.f32 %v181, %v187
  %v205 = vmul.f32 %v179, %v191
  %v206 = vmul.f32 %v177, %v195
  %v207 = vmul.f32 %v175, %v199
  %v208 = vmul.f32 %v182, %v187
  %v209 = vmul.f32 %v180, %v191
  %v210 = vmul.f32 %v178, %v195
  %v211 = vmul.f32 %v176, %v199
  %v212 = vpack.c.bf16 %v208, %v204
  %v213 = vpack.c.bf16 %v209, %v205
  %v214 = vpack.c.bf16 %v210, %v206
  %v215 = vpack.c.bf16 %v211, %v207
  %216 = vrot.lane.b32.xlu0 %v32, 1
  %v217 = vpop.permute.xlu0 %216
  %218 = vrot.lane.b32.xlu0 %v36, 1
  %v219 = vpop.permute.xlu0 %218
  %220 = vrot.lane.b32.xlu0 %v33, 1
  %v221 = vpop.permute.xlu0 %220
  %222 = vrot.lane.b32.xlu0 %v37, 1
  %v223 = vpop.permute.xlu0 %222
  %224 = vrot.lane.b32.xlu0 %v34, 1
  %v225 = vpop.permute.xlu0 %224
  %226 = vrot.lane.b32.xlu0 %v38, 1
  %v227 = vpop.permute.xlu0 %226
  %228 = vrot.lane.b32.xlu0 %v35, 1
  %v229 = vpop.permute.xlu0 %228
  %230 = vrot.lane.b32.xlu0 %v39, 1
  %v231 = vpop.permute.xlu0 %230
  %vm232 = vcmp.lt.s32.totalorder %v57, 1
  %v233 = vsel %vm232, %v225, %v229
  %v234 = vsel %vm232, %v227, %v231
  %v235 = vsel %vm232, %v221, %v225
  %v236 = vsel %vm232, %v223, %v227
  %v237 = vsel %vm232, %v217, %v221
  %v238 = vsel %vm232, %v219, %v223
  %v239 = vsel %vm232, %v229, %v217
  %v240 = vsel %vm232, %v231, %v219
  %v242 = vlaneseq
  %v243 = vshrl.u32 %v242, 7
  %v244 = vsub.s32 0, %v243
  %v245 = vrot.slane %v24, %v244
  %v246 = vlaneseq
  %v247 = vshrl.u32 %v246, 7
  %v248 = vsub.s32 1, %v247
  %v249 = vrot.slane %v24, %v248
  %v250 = vlaneseq
  %v251 = vshrl.u32 %v250, 7
  %v252 = vsub.s32 2, %v251
  %v253 = vrot.slane %v24, %v252
  %v254 = vlaneseq
  %v255 = vshrl.u32 %v254, 7
  %v256 = vsub.s32 3, %v255
  %v257 = vrot.slane %v24, %v256
  %v262 = vmul.f32 %v239, %v245
  %v263 = vmul.f32 %v237, %v249
  %v264 = vmul.f32 %v235, %v253
  %v265 = vmul.f32 %v233, %v257
  %v266 = vmul.f32 %v240, %v245
  %v267 = vmul.f32 %v238, %v249
  %v268 = vmul.f32 %v236, %v253
  %v269 = vmul.f32 %v234, %v257
  %v270 = vpack.c.bf16 %v266, %v262
  %v271 = vpack.c.bf16 %v267, %v263
  %v272 = vpack.c.bf16 %v268, %v264
  %v273 = vpack.c.bf16 %v269, %v265
  %v275 = vlaneseq
  %v276 = vshrl.u32 %v275, 7
  %v277 = vsub.s32 0, %v276
  %v278 = vrot.slane %v25, %v277
  %v279 = vlaneseq
  %v280 = vshrl.u32 %v279, 7
  %v281 = vsub.s32 1, %v280
  %v282 = vrot.slane %v25, %v281
  %v283 = vlaneseq
  %v284 = vshrl.u32 %v283, 7
  %v285 = vsub.s32 2, %v284
  %v286 = vrot.slane %v25, %v285
  %v287 = vlaneseq
  %v288 = vshrl.u32 %v287, 7
  %v289 = vsub.s32 3, %v288
  %v290 = vrot.slane %v25, %v289
  %v295 = vmul.f32 %v32, %v278
  %v296 = vmul.f32 %v33, %v282
  %v297 = vmul.f32 %v34, %v286
  %v298 = vmul.f32 %v35, %v290
  %v299 = vmul.f32 %v36, %v278
  %v300 = vmul.f32 %v37, %v282
  %v301 = vmul.f32 %v38, %v286
  %v302 = vmul.f32 %v39, %v290
  %v303 = vpack.c.bf16 %v299, %v295
  %v304 = vpack.c.bf16 %v300, %v296
  %v305 = vpack.c.bf16 %v301, %v297
  %v306 = vpack.c.bf16 %v302, %v298
  %307 = vrot.lane.b32.xlu0 %v32, 127
  %v308 = vpop.permute.xlu0 %307
  %309 = vrot.lane.b32.xlu0 %v36, 127
  %v310 = vpop.permute.xlu0 %309
  %311 = vrot.lane.b32.xlu0 %v33, 127
  %v312 = vpop.permute.xlu0 %311
  %313 = vrot.lane.b32.xlu0 %v37, 127
  %v314 = vpop.permute.xlu0 %313
  %315 = vrot.lane.b32.xlu0 %v34, 127
  %v316 = vpop.permute.xlu0 %315
  %317 = vrot.lane.b32.xlu0 %v38, 127
  %v318 = vpop.permute.xlu0 %317
  %319 = vrot.lane.b32.xlu0 %v35, 127
  %v320 = vpop.permute.xlu0 %319
  %321 = vrot.lane.b32.xlu0 %v39, 127
  %v322 = vpop.permute.xlu0 %321
  %vm323 = vcmp.lt.s32.totalorder %v57, 127
  %v324 = vsel %vm323, %v316, %v320
  %v325 = vsel %vm323, %v318, %v322
  %v326 = vsel %vm323, %v312, %v316
  %v327 = vsel %vm323, %v314, %v318
  %v328 = vsel %vm323, %v308, %v312
  %v329 = vsel %vm323, %v310, %v314
  %v330 = vsel %vm323, %v320, %v308
  %v331 = vsel %vm323, %v322, %v310
  %v333 = vlaneseq
  %v334 = vshrl.u32 %v333, 7
  %v335 = vsub.s32 0, %v334
  %v336 = vrot.slane %v26, %v335
  %v337 = vlaneseq
  %v338 = vshrl.u32 %v337, 7
  %v339 = vsub.s32 1, %v338
  %v340 = vrot.slane %v26, %v339
  %v341 = vlaneseq
  %v342 = vshrl.u32 %v341, 7
  %v343 = vsub.s32 2, %v342
  %v344 = vrot.slane %v26, %v343
  %v345 = vlaneseq
  %v346 = vshrl.u32 %v345, 7
  %v347 = vsub.s32 3, %v346
  %v348 = vrot.slane %v26, %v347
  %v353 = vmul.f32 %v328, %v336
  %v354 = vmul.f32 %v326, %v340
  %v355 = vmul.f32 %v324, %v344
  %v356 = vmul.f32 %v330, %v348
  %v357 = vmul.f32 %v329, %v336
  %v358 = vmul.f32 %v327, %v340
  %v359 = vmul.f32 %v325, %v344
  %v360 = vmul.f32 %v331, %v348
  %v361 = vpack.c.bf16 %v357, %v353
  %v362 = vpack.c.bf16 %v358, %v354
  %v363 = vpack.c.bf16 %v359, %v355
  %v364 = vpack.c.bf16 %v360, %v356
  %365 = vrot.lane.b32.xlu0 %v32, 113
  %v366 = vpop.permute.xlu0 %365
  %367 = vrot.lane.b32.xlu0 %v36, 113
  %v368 = vpop.permute.xlu0 %367
  %369 = vrot.lane.b32.xlu0 %v33, 113
  %v370 = vpop.permute.xlu0 %369
  %371 = vrot.lane.b32.xlu0 %v37, 113
  %v372 = vpop.permute.xlu0 %371
  %373 = vrot.lane.b32.xlu0 %v34, 113
  %v374 = vpop.permute.xlu0 %373
  %375 = vrot.lane.b32.xlu0 %v38, 113
  %v376 = vpop.permute.xlu0 %375
  %377 = vrot.lane.b32.xlu0 %v35, 113
  %v378 = vpop.permute.xlu0 %377
  %379 = vrot.lane.b32.xlu0 %v39, 113
  %v380 = vpop.permute.xlu0 %379
  %vm381 = vcmp.lt.s32.totalorder %v57, 113
  %v382 = vsel %vm381, %v374, %v378
  %v383 = vsel %vm381, %v376, %v380
  %v384 = vsel %vm381, %v370, %v374
  %v385 = vsel %vm381, %v372, %v376
  %v386 = vsel %vm381, %v366, %v370
  %v387 = vsel %vm381, %v368, %v372
  %v388 = vsel %vm381, %v378, %v366
  %v389 = vsel %vm381, %v380, %v368
  %v391 = vlaneseq
  %v392 = vshrl.u32 %v391, 7
  %v393 = vsub.s32 0, %v392
  %v394 = vrot.slane %v27, %v393
  %v395 = vlaneseq
  %v396 = vshrl.u32 %v395, 7
  %v397 = vsub.s32 1, %v396
  %v398 = vrot.slane %v27, %v397
  %v399 = vlaneseq
  %v400 = vshrl.u32 %v399, 7
  %v401 = vsub.s32 2, %v400
  %v402 = vrot.slane %v27, %v401
  %v403 = vlaneseq
  %v404 = vshrl.u32 %v403, 7
  %v405 = vsub.s32 3, %v404
  %v406 = vrot.slane %v27, %v405
  %v411 = vmul.f32 %v386, %v394
  %v412 = vmul.f32 %v384, %v398
  %v413 = vmul.f32 %v382, %v402
  %v414 = vmul.f32 %v388, %v406
  %v415 = vmul.f32 %v387, %v394
  %v416 = vmul.f32 %v385, %v398
  %v417 = vmul.f32 %v383, %v402
  %v418 = vmul.f32 %v389, %v406
  %v419 = vpack.c.bf16 %v415, %v411
  %v420 = vpack.c.bf16 %v416, %v412
  %v421 = vpack.c.bf16 %v417, %v413
  %v422 = vpack.c.bf16 %v418, %v414
  %423 = vrot.lane.b32.xlu0 %v32, 112
  %v424 = vpop.permute.xlu0 %423
  %425 = vrot.lane.b32.xlu0 %v36, 112
  %v426 = vpop.permute.xlu0 %425
  %427 = vrot.lane.b32.xlu0 %v33, 112
  %v428 = vpop.permute.xlu0 %427
  %429 = vrot.lane.b32.xlu0 %v37, 112
  %v430 = vpop.permute.xlu0 %429
  %431 = vrot.lane.b32.xlu0 %v34, 112
  %v432 = vpop.permute.xlu0 %431
  %433 = vrot.lane.b32.xlu0 %v38, 112
  %v434 = vpop.permute.xlu0 %433
  %435 = vrot.lane.b32.xlu0 %v35, 112
  %v436 = vpop.permute.xlu0 %435
  %437 = vrot.lane.b32.xlu0 %v39, 112
  %v438 = vpop.permute.xlu0 %437
  %vm439 = vcmp.lt.s32.totalorder %v57, 112
  %v440 = vsel %vm439, %v432, %v436
  %v441 = vsel %vm439, %v434, %v438
  %v442 = vsel %vm439, %v428, %v432
  %v443 = vsel %vm439, %v430, %v434
  %v444 = vsel %vm439, %v424, %v428
  %v445 = vsel %vm439, %v426, %v430
  %v446 = vsel %vm439, %v436, %v424
  %v447 = vsel %vm439, %v438, %v426
  %v449 = vlaneseq
  %v450 = vshrl.u32 %v449, 7
  %v451 = vsub.s32 0, %v450
  %v452 = vrot.slane %v28, %v451
  %v453 = vlaneseq
  %v454 = vshrl.u32 %v453, 7
  %v455 = vsub.s32 1, %v454
  %v456 = vrot.slane %v28, %v455
  %v457 = vlaneseq
  %v458 = vshrl.u32 %v457, 7
  %v459 = vsub.s32 2, %v458
  %v460 = vrot.slane %v28, %v459
  %v461 = vlaneseq
  %v462 = vshrl.u32 %v461, 7
  %v463 = vsub.s32 3, %v462
  %v464 = vrot.slane %v28, %v463
  %v469 = vmul.f32 %v444, %v452
  %v470 = vmul.f32 %v442, %v456
  %v471 = vmul.f32 %v440, %v460
  %v472 = vmul.f32 %v446, %v464
  %v473 = vmul.f32 %v445, %v452
  %v474 = vmul.f32 %v443, %v456
  %v475 = vmul.f32 %v441, %v460
  %v476 = vmul.f32 %v447, %v464
  %v477 = vpack.c.bf16 %v473, %v469
  %v478 = vpack.c.bf16 %v474, %v470
  %v479 = vpack.c.bf16 %v475, %v471
  %v480 = vpack.c.bf16 %v476, %v472
  %481 = vrot.lane.b32.xlu0 %v32, 111
  %v482 = vpop.permute.xlu0 %481
  %483 = vrot.lane.b32.xlu0 %v36, 111
  %v484 = vpop.permute.xlu0 %483
  %485 = vrot.lane.b32.xlu0 %v33, 111
  %v486 = vpop.permute.xlu0 %485
  %487 = vrot.lane.b32.xlu0 %v37, 111
  %v488 = vpop.permute.xlu0 %487
  %489 = vrot.lane.b32.xlu0 %v34, 111
  %v490 = vpop.permute.xlu0 %489
  %491 = vrot.lane.b32.xlu0 %v38, 111
  %v492 = vpop.permute.xlu0 %491
  %493 = vrot.lane.b32.xlu0 %v35, 111
  %v494 = vpop.permute.xlu0 %493
  %495 = vrot.lane.b32.xlu0 %v39, 111
  %v496 = vpop.permute.xlu0 %495
  %vm497 = vcmp.lt.s32.totalorder %v57, 111
  %v498 = vsel %vm497, %v490, %v494
  %v499 = vsel %vm497, %v492, %v496
  %v500 = vsel %vm497, %v486, %v490
  %v501 = vsel %vm497, %v488, %v492
  %v502 = vsel %vm497, %v482, %v486
  %v503 = vsel %vm497, %v484, %v488
  %v504 = vsel %vm497, %v494, %v482
  %v505 = vsel %vm497, %v496, %v484
  %v507 = vlaneseq
  %v508 = vshrl.u32 %v507, 7
  %v509 = vsub.s32 0, %v508
  %v510 = vrot.slane %v29, %v509
  %v511 = vlaneseq
  %v512 = vshrl.u32 %v511, 7
  %v513 = vsub.s32 1, %v512
  %v514 = vrot.slane %v29, %v513
  %v515 = vlaneseq
  %v516 = vshrl.u32 %v515, 7
  %v517 = vsub.s32 2, %v516
  %v518 = vrot.slane %v29, %v517
  %v519 = vlaneseq
  %v520 = vshrl.u32 %v519, 7
  %v521 = vsub.s32 3, %v520
  %v522 = vrot.slane %v29, %v521
  %v527 = vmul.f32 %v502, %v510
  %v528 = vmul.f32 %v500, %v514
  %v529 = vmul.f32 %v498, %v518
  %v530 = vmul.f32 %v504, %v522
  %v531 = vmul.f32 %v503, %v510
  %v532 = vmul.f32 %v501, %v514
  %v533 = vmul.f32 %v499, %v518
  %v534 = vmul.f32 %v505, %v522
  %v535 = vpack.c.bf16 %v531, %v527
  %v536 = vpack.c.bf16 %v532, %v528
  %v537 = vpack.c.bf16 %v533, %v529
  %v538 = vpack.c.bf16 %v534, %v530
  %v539 = vld [vmem:[%s2] sm:$0xff]
  %v540 = vld [vmem:[%s2 + $0x8] sm:$0xff]
  %542 = vset.pattern.permute.xlu0 0
  %543 = vperm.xlu0 %542, %v30
  %v544 = vpop.permute.xlu0 %543
  %547 = vset.pattern.permute.xlu0 0
  %548 = vperm.xlu0 %547, %v31
  %v549 = vpop.permute.xlu0 %548
  %v553 = vunpack.c.l.b16 %v539
  %v554 = vunpack.c.h.b16 %v539
  %v555 = vunpack.c.l.b16 %v540
  %v556 = vunpack.c.h.b16 %v540
  %v557 = vpack.c.b16 %v555, %v553
  %v558 = vpack.c.b16 %v556, %v554
  %vm560 = vcmask 130048
  %v562 = vsel %vm560, %v558, 0
  %564 = vmatprep.subr.bf16.mxu0 %v478
  %565 = vmatpush1.bf16.msra.mxu0 %v477
  %566 = vmatprep.subr.bf16.mxu0 %v420
  %567 = vmatpush1.bf16.msra.mxu0 %v419
  %568 = vmatprep.subr.bf16.mxu0 %v362
  %569 = vmatpush1.bf16.msra.mxu0 %v361
  %570 = vmatprep.subr.bf16.mxu0 %v304
  %571 = vmatpush1.bf16.msra.mxu0 %v303
  %572 = vmatprep.subr.bf16.mxu0 %v271
  %573 = vmatpush1.bf16.msra.mxu0 %v270
  %574 = vmatprep.subr.bf16.mxu0 %v213
  %575 = vmatpush1.bf16.msra.mxu0 %v212
  %576 = vmatprep.subr.bf16.mxu0 %v155
  %577 = vmatpush1.bf16.msra.mxu0 %v154
  %578 = vmatprep.subr.bf16.mxu0 %v97
  %579 = vmatpush1.bf16.msra.mxu0 %v96
  %580 = vmatprep.subr.bf16.mxu0 0
  %581 = vmatpush2.bf16.msra.mxu0 0
  %582 = vmatprep.subr.bf16.mxu0 0
  %583 = vmatpush2.bf16.msra.mxu0 0
  %584 = vmatprep.subr.bf16.mxu0 0
  %585 = vmatpush2.bf16.msra.mxu0 0
  %586 = vmatprep.subr.bf16.mxu0 0
  %587 = vmatpush2.bf16.msra.mxu0 0
  %588 = vmatprep.subr.bf16.mxu0 0
  %589 = vmatpush2.bf16.msra.mxu0 0
  %590 = vmatprep.subr.bf16.mxu0 0
  %591 = vmatpush2.bf16.msra.mxu0 0
  %592 = vmatprep.subr.bf16.mxu0 0
  %593 = vmatpush2.bf16.msra.mxu0 0
  %594 = vmatprep.subr.bf16.mxu0 %v536
  %595 = vmatpush2.bf16.msra.mxu0 %v535
  %596 = vmatprep.mubr.bf16.mxu0 %v562
  %597 = vmatmul.mubr.bf16.gmra.mxu0 %v557
  %v598 = vpop.f32.mrf.mxu0
  %v599 = vadd.f32 %v544, %v598
  %v600 = vpop.f32.mrf.mxu0
  %v601 = vadd.f32 %v544, %v600
  %v602 = vpop.f32.mrf.mxu0
  %v603 = vadd.f32 %v549, %v602
  %v604 = vpop.f32.mrf.mxu0
  %v605 = vadd.f32 %v549, %v604
  %606 = vdwg.mxu0
  %607 = vmatprep.subr.bf16.mxu0 %v480
  %608 = vmatpush1.bf16.msra.mxu0 %v479
  %609 = vmatprep.subr.bf16.mxu0 %v422
  %610 = vmatpush1.bf16.msra.mxu0 %v421
  %611 = vmatprep.subr.bf16.mxu0 %v364
  %612 = vmatpush1.bf16.msra.mxu0 %v363
  %613 = vmatprep.subr.bf16.mxu0 %v306
  %614 = vmatpush1.bf16.msra.mxu0 %v305
  %615 = vmatprep.subr.bf16.mxu0 %v273
  %616 = vmatpush1.bf16.msra.mxu0 %v272
  %617 = vmatprep.subr.bf16.mxu0 %v215
  %618 = vmatpush1.bf16.msra.mxu0 %v214
  %619 = vmatprep.subr.bf16.mxu0 %v157
  %620 = vmatpush1.bf16.msra.mxu0 %v156
  %621 = vmatprep.subr.bf16.mxu0 %v99
  %622 = vmatpush1.bf16.msra.mxu0 %v98
  %623 = vmatprep.subr.bf16.mxu0 0
  %624 = vmatpush2.bf16.msra.mxu0 0
  %625 = vmatprep.subr.bf16.mxu0 0
  %626 = vmatpush2.bf16.msra.mxu0 0
  %627 = vmatprep.subr.bf16.mxu0 0
  %628 = vmatpush2.bf16.msra.mxu0 0
  %629 = vmatprep.subr.bf16.mxu0 0
  %630 = vmatpush2.bf16.msra.mxu0 0
  %631 = vmatprep.subr.bf16.mxu0 0
  %632 = vmatpush2.bf16.msra.mxu0 0
  %633 = vmatprep.subr.bf16.mxu0 0
  %634 = vmatpush2.bf16.msra.mxu0 0
  %635 = vmatprep.subr.bf16.mxu0 0
  %636 = vmatpush2.bf16.msra.mxu0 0
  %637 = vmatprep.subr.bf16.mxu0 %v538
  %638 = vmatpush2.bf16.msra.mxu0 %v537
  %639 = vmatprep.mubr.bf16.mxu0 %v562
  %640 = vmatmul.mubr.bf16.gmra.mxu0 %v557
  %v641 = vpop.f32.mrf.mxu0
  %v642 = vadd.f32 %v544, %v641
  %v643 = vpop.f32.mrf.mxu0
  %v644 = vadd.f32 %v544, %v643
  %v645 = vpop.f32.mrf.mxu0
  %v646 = vadd.f32 %v549, %v645
  %v647 = vpop.f32.mrf.mxu0
  %v648 = vadd.f32 %v549, %v647
  %649 = vdwg.mxu0
  %v650 = vmax.f32 %v599, 0.0
  %v651 = vmax.f32 %v601, 0.0
  %v652 = vmax.f32 %v642, 0.0
  %v653 = vmax.f32 %v644, 0.0
  %v654 = vmax.f32 %v603, 0.0
  %v655 = vmax.f32 %v605, 0.0
  %v656 = vmax.f32 %v646, 0.0
  %v657 = vmax.f32 %v648, 0.0
  %658 = vset.pattern.permute.xlu0 1
  %659 = vperm.xlu0 %658, %v30
  %v660 = vpop.permute.xlu0 %659
  %662 = vset.pattern.permute.xlu0 1
  %663 = vperm.xlu0 %662, %v31
  %v664 = vpop.permute.xlu0 %663
  %v666 = vmul.f32 %v650, %v660
  %v667 = vmul.f32 %v651, %v660
  %v668 = vmul.f32 %v652, %v660
  %v669 = vmul.f32 %v653, %v660
  %v670 = vmul.f32 %v654, %v664
  %v671 = vmul.f32 %v655, %v664
  %v672 = vmul.f32 %v656, %v664
  %v673 = vmul.f32 %v657, %v664
  %674 = vset.pattern.permute.xlu0 2
  %675 = vperm.xlu0 %674, %v30
  %v676 = vpop.permute.xlu0 %675
  %678 = vset.pattern.permute.xlu0 2
  %679 = vperm.xlu0 %678, %v31
  %v680 = vpop.permute.xlu0 %679
  %v682 = vadd.f32 %v666, %v676
  %v683 = vadd.f32 %v667, %v676
  %v684 = vadd.f32 %v668, %v676
  %v685 = vadd.f32 %v669, %v676
  %v686 = vadd.f32 %v670, %v680
  %v687 = vadd.f32 %v671, %v680
  %v688 = vadd.f32 %v672, %v680
  %v689 = vadd.f32 %v673, %v680
  %690 = vrot.lane.b32.xlu0 %v682, 17
  %v691 = vpop.permute.xlu0 %690
  %692 = vrot.lane.b32.xlu0 %v686, 17
  %v693 = vpop.permute.xlu0 %692
  %694 = vrot.lane.b32.xlu0 %v683, 17
  %v695 = vpop.permute.xlu0 %694
  %696 = vrot.lane.b32.xlu0 %v687, 17
  %v697 = vpop.permute.xlu0 %696
  %698 = vrot.lane.b32.xlu0 %v684, 17
  %v699 = vpop.permute.xlu0 %698
  %700 = vrot.lane.b32.xlu0 %v688, 17
  %v701 = vpop.permute.xlu0 %700
  %702 = vrot.lane.b32.xlu0 %v685, 17
  %v703 = vpop.permute.xlu0 %702
  %704 = vrot.lane.b32.xlu0 %v689, 17
  %v705 = vpop.permute.xlu0 %704
  %v706 = vsel %vm58, %v699, %v703
  %v707 = vsel %vm58, %v701, %v705
  %v708 = vsel %vm58, %v695, %v699
  %v709 = vsel %vm58, %v697, %v701
  %v710 = vsel %vm58, %v691, %v695
  %v711 = vsel %vm58, %v693, %v697
  %v712 = vsel %vm58, %v703, %v691
  %v713 = vsel %vm58, %v705, %v693
  %v714 = vmul.f32 %v712, %v71
  %v715 = vmul.f32 %v710, %v75
  %v716 = vmul.f32 %v708, %v79
  %v717 = vmul.f32 %v706, %v83
  %v718 = vmul.f32 %v713, %v71
  %v719 = vmul.f32 %v711, %v75
  %v720 = vmul.f32 %v709, %v79
  %v721 = vmul.f32 %v707, %v83
  %v722 = vpack.c.bf16 %v718, %v714
  %v723 = vpack.c.bf16 %v719, %v715
  %v724 = vpack.c.bf16 %v720, %v716
  %v725 = vpack.c.bf16 %v721, %v717
  %726 = vrot.lane.b32.xlu0 %v682, 16
  %v727 = vpop.permute.xlu0 %726
  %728 = vrot.lane.b32.xlu0 %v686, 16
  %v729 = vpop.permute.xlu0 %728
  %730 = vrot.lane.b32.xlu0 %v683, 16
  %v731 = vpop.permute.xlu0 %730
  %732 = vrot.lane.b32.xlu0 %v687, 16
  %v733 = vpop.permute.xlu0 %732
  %734 = vrot.lane.b32.xlu0 %v684, 16
  %v735 = vpop.permute.xlu0 %734
  %736 = vrot.lane.b32.xlu0 %v688, 16
  %v737 = vpop.permute.xlu0 %736
  %738 = vrot.lane.b32.xlu0 %v685, 16
  %v739 = vpop.permute.xlu0 %738
  %740 = vrot.lane.b32.xlu0 %v689, 16
  %v741 = vpop.permute.xlu0 %740
  %v742 = vsel %vm116, %v735, %v739
  %v743 = vsel %vm116, %v737, %v741
  %v744 = vsel %vm116, %v731, %v735
  %v745 = vsel %vm116, %v733, %v737
  %v746 = vsel %vm116, %v727, %v731
  %v747 = vsel %vm116, %v729, %v733
  %v748 = vsel %vm116, %v739, %v727
  %v749 = vsel %vm116, %v741, %v729
  %v750 = vmul.f32 %v748, %v129
  %v751 = vmul.f32 %v746, %v133
  %v752 = vmul.f32 %v744, %v137
  %v753 = vmul.f32 %v742, %v141
  %v754 = vmul.f32 %v749, %v129
  %v755 = vmul.f32 %v747, %v133
  %v756 = vmul.f32 %v745, %v137
  %v757 = vmul.f32 %v743, %v141
  %v758 = vpack.c.bf16 %v754, %v750
  %v759 = vpack.c.bf16 %v755, %v751
  %v760 = vpack.c.bf16 %v756, %v752
  %v761 = vpack.c.bf16 %v757, %v753
  %762 = vrot.lane.b32.xlu0 %v682, 15
  %v763 = vpop.permute.xlu0 %762
  %764 = vrot.lane.b32.xlu0 %v686, 15
  %v765 = vpop.permute.xlu0 %764
  %766 = vrot.lane.b32.xlu0 %v683, 15
  %v767 = vpop.permute.xlu0 %766
  %768 = vrot.lane.b32.xlu0 %v687, 15
  %v769 = vpop.permute.xlu0 %768
  %770 = vrot.lane.b32.xlu0 %v684, 15
  %v771 = vpop.permute.xlu0 %770
  %772 = vrot.lane.b32.xlu0 %v688, 15
  %v773 = vpop.permute.xlu0 %772
  %774 = vrot.lane.b32.xlu0 %v685, 15
  %v775 = vpop.permute.xlu0 %774
  %776 = vrot.lane.b32.xlu0 %v689, 15
  %v777 = vpop.permute.xlu0 %776
  %v778 = vsel %vm174, %v771, %v775
  %v779 = vsel %vm174, %v773, %v777
  %v780 = vsel %vm174, %v767, %v771
  %v781 = vsel %vm174, %v769, %v773
  %v782 = vsel %vm174, %v763, %v767
  %v783 = vsel %vm174, %v765, %v769
  %v784 = vsel %vm174, %v775, %v763
  %v785 = vsel %vm174, %v777, %v765
  %v786 = vmul.f32 %v784, %v187
  %v787 = vmul.f32 %v782, %v191
  %v788 = vmul.f32 %v780, %v195
  %v789 = vmul.f32 %v778, %v199
  %v790 = vmul.f32 %v785, %v187
  %v791 = vmul.f32 %v783, %v191
  %v792 = vmul.f32 %v781, %v195
  %v793 = vmul.f32 %v779, %v199
  %v794 = vpack.c.bf16 %v790, %v786
  %v795 = vpack.c.bf16 %v791, %v787
  %v796 = vpack.c.bf16 %v792, %v788
  %v797 = vpack.c.bf16 %v793, %v789
  %798 = vrot.lane.b32.xlu0 %v682, 1
  %v799 = vpop.permute.xlu0 %798
  %800 = vrot.lane.b32.xlu0 %v686, 1
  %v801 = vpop.permute.xlu0 %800
  %802 = vrot.lane.b32.xlu0 %v683, 1
  %v803 = vpop.permute.xlu0 %802
  %804 = vrot.lane.b32.xlu0 %v687, 1
  %v805 = vpop.permute.xlu0 %804
  %806 = vrot.lane.b32.xlu0 %v684, 1
  %v807 = vpop.permute.xlu0 %806
  %808 = vrot.lane.b32.xlu0 %v688, 1
  %v809 = vpop.permute.xlu0 %808
  %810 = vrot.lane.b32.xlu0 %v685, 1
  %v811 = vpop.permute.xlu0 %810
  %812 = vrot.lane.b32.xlu0 %v689, 1
  %v813 = vpop.permute.xlu0 %812
  %v814 = vsel %vm232, %v807, %v811
  %v815 = vsel %vm232, %v809, %v813
  %v816 = vsel %vm232, %v803, %v807
  %v817 = vsel %vm232, %v805, %v809
  %v818 = vsel %vm232, %v799, %v803
  %v819 = vsel %vm232, %v801, %v805
  %v820 = vsel %vm232, %v811, %v799
  %v821 = vsel %vm232, %v813, %v801
  %v822 = vmul.f32 %v820, %v245
  %v823 = vmul.f32 %v818, %v249
  %v824 = vmul.f32 %v816, %v253
  %v825 = vmul.f32 %v814, %v257
  %v826 = vmul.f32 %v821, %v245
  %v827 = vmul.f32 %v819, %v249
  %v828 = vmul.f32 %v817, %v253
  %v829 = vmul.f32 %v815, %v257
  %v830 = vpack.c.bf16 %v826, %v822
  %v831 = vpack.c.bf16 %v827, %v823
  %v832 = vpack.c.bf16 %v828, %v824
  %v833 = vpack.c.bf16 %v829, %v825
  %v834 = vmul.f32 %v682, %v278
  %v835 = vmul.f32 %v683, %v282
  %v836 = vmul.f32 %v684, %v286
  %v837 = vmul.f32 %v685, %v290
  %v838 = vmul.f32 %v686, %v278
  %v839 = vmul.f32 %v687, %v282
  %v840 = vmul.f32 %v688, %v286
  %v841 = vmul.f32 %v689, %v290
  %v842 = vpack.c.bf16 %v838, %v834
  %v843 = vpack.c.bf16 %v839, %v835
  %v844 = vpack.c.bf16 %v840, %v836
  %v845 = vpack.c.bf16 %v841, %v837
  %846 = vrot.lane.b32.xlu0 %v682, 127
  %v847 = vpop.permute.xlu0 %846
  %848 = vrot.lane.b32.xlu0 %v686, 127
  %v849 = vpop.permute.xlu0 %848
  %850 = vrot.lane.b32.xlu0 %v683, 127
  %v851 = vpop.permute.xlu0 %850
  %852 = vrot.lane.b32.xlu0 %v687, 127
  %v853 = vpop.permute.xlu0 %852
  %854 = vrot.lane.b32.xlu0 %v684, 127
  %v855 = vpop.permute.xlu0 %854
  %856 = vrot.lane.b32.xlu0 %v688, 127
  %v857 = vpop.permute.xlu0 %856
  %858 = vrot.lane.b32.xlu0 %v685, 127
  %v859 = vpop.permute.xlu0 %858
  %860 = vrot.lane.b32.xlu0 %v689, 127
  %v861 = vpop.permute.xlu0 %860
  %v862 = vsel %vm323, %v855, %v859
  %v863 = vsel %vm323, %v857, %v861
  %v864 = vsel %vm323, %v851, %v855
  %v865 = vsel %vm323, %v853, %v857
  %v866 = vsel %vm323, %v847, %v851
  %v867 = vsel %vm323, %v849, %v853
  %v868 = vsel %vm323, %v859, %v847
  %v869 = vsel %vm323, %v861, %v849
  %v870 = vmul.f32 %v866, %v336
  %v871 = vmul.f32 %v864, %v340
  %v872 = vmul.f32 %v862, %v344
  %v873 = vmul.f32 %v868, %v348
  %v874 = vmul.f32 %v867, %v336
  %v875 = vmul.f32 %v865, %v340
  %v876 = vmul.f32 %v863, %v344
  %v877 = vmul.f32 %v869, %v348
  %v878 = vpack.c.bf16 %v874, %v870
  %v879 = vpack.c.bf16 %v875, %v871
  %v880 = vpack.c.bf16 %v876, %v872
  %v881 = vpack.c.bf16 %v877, %v873
  %882 = vrot.lane.b32.xlu0 %v682, 113
  %v883 = vpop.permute.xlu0 %882
  %884 = vrot.lane.b32.xlu0 %v686, 113
  %v885 = vpop.permute.xlu0 %884
  %886 = vrot.lane.b32.xlu0 %v683, 113
  %v887 = vpop.permute.xlu0 %886
  %888 = vrot.lane.b32.xlu0 %v687, 113
  %v889 = vpop.permute.xlu0 %888
  %890 = vrot.lane.b32.xlu0 %v684, 113
  %v891 = vpop.permute.xlu0 %890
  %892 = vrot.lane.b32.xlu0 %v688, 113
  %v893 = vpop.permute.xlu0 %892
  %894 = vrot.lane.b32.xlu0 %v685, 113
  %v895 = vpop.permute.xlu0 %894
  %896 = vrot.lane.b32.xlu0 %v689, 113
  %v897 = vpop.permute.xlu0 %896
  %v898 = vsel %vm381, %v891, %v895
  %v899 = vsel %vm381, %v893, %v897
  %v900 = vsel %vm381, %v887, %v891
  %v901 = vsel %vm381, %v889, %v893
  %v902 = vsel %vm381, %v883, %v887
  %v903 = vsel %vm381, %v885, %v889
  %v904 = vsel %vm381, %v895, %v883
  %v905 = vsel %vm381, %v897, %v885
  %v906 = vmul.f32 %v902, %v394
  %v907 = vmul.f32 %v900, %v398
  %v908 = vmul.f32 %v898, %v402
  %v909 = vmul.f32 %v904, %v406
  %v910 = vmul.f32 %v903, %v394
  %v911 = vmul.f32 %v901, %v398
  %v912 = vmul.f32 %v899, %v402
  %v913 = vmul.f32 %v905, %v406
  %v914 = vpack.c.bf16 %v910, %v906
  %v915 = vpack.c.bf16 %v911, %v907
  %v916 = vpack.c.bf16 %v912, %v908
  %v917 = vpack.c.bf16 %v913, %v909
  %918 = vrot.lane.b32.xlu0 %v682, 112
  %v919 = vpop.permute.xlu0 %918
  %920 = vrot.lane.b32.xlu0 %v686, 112
  %v921 = vpop.permute.xlu0 %920
  %922 = vrot.lane.b32.xlu0 %v683, 112
  %v923 = vpop.permute.xlu0 %922
  %924 = vrot.lane.b32.xlu0 %v687, 112
  %v925 = vpop.permute.xlu0 %924
  %926 = vrot.lane.b32.xlu0 %v684, 112
  %v927 = vpop.permute.xlu0 %926
  %928 = vrot.lane.b32.xlu0 %v688, 112
  %v929 = vpop.permute.xlu0 %928
  %930 = vrot.lane.b32.xlu0 %v685, 112
  %v931 = vpop.permute.xlu0 %930
  %932 = vrot.lane.b32.xlu0 %v689, 112
  %v933 = vpop.permute.xlu0 %932
  %v934 = vsel %vm439, %v927, %v931
  %v935 = vsel %vm439, %v929, %v933
  %v936 = vsel %vm439, %v923, %v927
  %v937 = vsel %vm439, %v925, %v929
  %v938 = vsel %vm439, %v919, %v923
  %v939 = vsel %vm439, %v921, %v925
  %v940 = vsel %vm439, %v931, %v919
  %v941 = vsel %vm439, %v933, %v921
  %v942 = vmul.f32 %v938, %v452
  %v943 = vmul.f32 %v936, %v456
  %v944 = vmul.f32 %v934, %v460
  %v945 = vmul.f32 %v940, %v464
  %v946 = vmul.f32 %v939, %v452
  %v947 = vmul.f32 %v937, %v456
  %v948 = vmul.f32 %v935, %v460
  %v949 = vmul.f32 %v941, %v464
  %v950 = vpack.c.bf16 %v946, %v942
  %v951 = vpack.c.bf16 %v947, %v943
  %v952 = vpack.c.bf16 %v948, %v944
  %v953 = vpack.c.bf16 %v949, %v945
  %954 = vrot.lane.b32.xlu0 %v682, 111
  %v955 = vpop.permute.xlu0 %954
  %956 = vrot.lane.b32.xlu0 %v686, 111
  %v957 = vpop.permute.xlu0 %956
  %958 = vrot.lane.b32.xlu0 %v683, 111
  %v959 = vpop.permute.xlu0 %958
  %960 = vrot.lane.b32.xlu0 %v687, 111
  %v961 = vpop.permute.xlu0 %960
  %962 = vrot.lane.b32.xlu0 %v684, 111
  %v963 = vpop.permute.xlu0 %962
  %964 = vrot.lane.b32.xlu0 %v688, 111
  %v965 = vpop.permute.xlu0 %964
  %966 = vrot.lane.b32.xlu0 %v685, 111
  %v967 = vpop.permute.xlu0 %966
  %968 = vrot.lane.b32.xlu0 %v689, 111
  %v969 = vpop.permute.xlu0 %968
  %v970 = vsel %vm497, %v963, %v967
  %v971 = vsel %vm497, %v965, %v969
  %v972 = vsel %vm497, %v959, %v963
  %v973 = vsel %vm497, %v961, %v965
  %v974 = vsel %vm497, %v955, %v959
  %v975 = vsel %vm497, %v957, %v961
  %v976 = vsel %vm497, %v967, %v955
  %v977 = vsel %vm497, %v969, %v957
  %v978 = vmul.f32 %v974, %v510
  %v979 = vmul.f32 %v972, %v514
  %v980 = vmul.f32 %v970, %v518
  %v981 = vmul.f32 %v976, %v522
  %v982 = vmul.f32 %v975, %v510
  %v983 = vmul.f32 %v973, %v514
  %v984 = vmul.f32 %v971, %v518
  %v985 = vmul.f32 %v977, %v522
  %v986 = vpack.c.bf16 %v982, %v978
  %v987 = vpack.c.bf16 %v983, %v979
  %v988 = vpack.c.bf16 %v984, %v980
  %v989 = vpack.c.bf16 %v985, %v981
  %v990 = vld [vmem:[%s3] sm:$0xff]
  %991 = vset.pattern.permute.xlu0 3
  %992 = vperm.xlu0 %991, %v30
  %v993 = vpop.permute.xlu0 %992
  %v996 = vunpack.c.l.b16 %v990
  %v997 = vunpack.c.h.b16 %v990
  %v998 = vpack.c.b16 %v996, %v996
  %v999 = vpack.c.b16 %v997, %v997
  %v1002 = vsel %vm560, %v999, 0
  %1004 = vmatprep.subr.bf16.mxu0 %v951
  %1005 = vmatpush1.bf16.msra.mxu0 %v950
  %1006 = vmatprep.subr.bf16.mxu0 %v915
  %1007 = vmatpush1.bf16.msra.mxu0 %v914
  %1008 = vmatprep.subr.bf16.mxu0 %v879
  %1009 = vmatpush1.bf16.msra.mxu0 %v878
  %1010 = vmatprep.subr.bf16.mxu0 %v843
  %1011 = vmatpush1.bf16.msra.mxu0 %v842
  %1012 = vmatprep.subr.bf16.mxu0 %v831
  %1013 = vmatpush1.bf16.msra.mxu0 %v830
  %1014 = vmatprep.subr.bf16.mxu0 %v795
  %1015 = vmatpush1.bf16.msra.mxu0 %v794
  %1016 = vmatprep.subr.bf16.mxu0 %v759
  %1017 = vmatpush1.bf16.msra.mxu0 %v758
  %1018 = vmatprep.subr.bf16.mxu0 %v723
  %1019 = vmatpush1.bf16.msra.mxu0 %v722
  %1020 = vmatprep.subr.bf16.mxu0 0
  %1021 = vmatpush2.bf16.msra.mxu0 0
  %1022 = vmatprep.subr.bf16.mxu0 0
  %1023 = vmatpush2.bf16.msra.mxu0 0
  %1024 = vmatprep.subr.bf16.mxu0 0
  %1025 = vmatpush2.bf16.msra.mxu0 0
  %1026 = vmatprep.subr.bf16.mxu0 0
  %1027 = vmatpush2.bf16.msra.mxu0 0
  %1028 = vmatprep.subr.bf16.mxu0 0
  %1029 = vmatpush2.bf16.msra.mxu0 0
  %1030 = vmatprep.subr.bf16.mxu0 0
  %1031 = vmatpush2.bf16.msra.mxu0 0
  %1032 = vmatprep.subr.bf16.mxu0 0
  %1033 = vmatpush2.bf16.msra.mxu0 0
  %1034 = vmatprep.subr.bf16.mxu0 %v987
  %1035 = vmatpush2.bf16.msra.mxu0 %v986
  %1036 = vmatprep.mubr.bf16.mxu0 %v1002
  %1037 = vmatmul.mubr.bf16.gmra.mxu0 %v998
  %v1038 = vpop.f32.mrf.mxu0
  %v1039 = vadd.f32 %v993, %v1038
  %v1040 = vpop.f32.mrf.mxu0
  %v1041 = vadd.f32 %v993, %v1040
  %v1042 = vpop.f32.mrf.mxu0
  %v1043 = vpop.f32.mrf.mxu0
  %1044 = vdwg.mxu0
  %1045 = vmatprep.subr.bf16.mxu0 %v953
  %1046 = vmatpush1.bf16.msra.mxu0 %v952
  %1047 = vmatprep.subr.bf16.mxu0 %v917
  %1048 = vmatpush1.bf16.msra.mxu0 %v916
  %1049 = vmatprep.subr.bf16.mxu0 %v881
  %1050 = vmatpush1.bf16.msra.mxu0 %v880
  %1051 = vmatprep.subr.bf16.mxu0 %v845
  %1052 = vmatpush1.bf16.msra.mxu0 %v844
  %1053 = vmatprep.subr.bf16.mxu0 %v833
  %1054 = vmatpush1.bf16.msra.mxu0 %v832
  %1055 = vmatprep.subr.bf16.mxu0 %v797
  %1056 = vmatpush1.bf16.msra.mxu0 %v796
  %1057 = vmatprep.subr.bf16.mxu0 %v761
  %1058 = vmatpush1.bf16.msra.mxu0 %v760
  %1059 = vmatprep.subr.bf16.mxu0 %v725
  %1060 = vmatpush1.bf16.msra.mxu0 %v724
  %1061 = vmatprep.subr.bf16.mxu0 0
  %1062 = vmatpush2.bf16.msra.mxu0 0
  %1063 = vmatprep.subr.bf16.mxu0 0
  %1064 = vmatpush2.bf16.msra.mxu0 0
  %1065 = vmatprep.subr.bf16.mxu0 0
  %1066 = vmatpush2.bf16.msra.mxu0 0
  %1067 = vmatprep.subr.bf16.mxu0 0
  %1068 = vmatpush2.bf16.msra.mxu0 0
  %1069 = vmatprep.subr.bf16.mxu0 0
  %1070 = vmatpush2.bf16.msra.mxu0 0
  %1071 = vmatprep.subr.bf16.mxu0 0
  %1072 = vmatpush2.bf16.msra.mxu0 0
  %1073 = vmatprep.subr.bf16.mxu0 0
  %1074 = vmatpush2.bf16.msra.mxu0 0
  %1075 = vmatprep.subr.bf16.mxu0 %v989
  %1076 = vmatpush2.bf16.msra.mxu0 %v988
  %1077 = vmatprep.mubr.bf16.mxu0 %v1002
  %1078 = vmatmul.mubr.bf16.gmra.mxu0 %v998
  %v1079 = vpop.f32.mrf.mxu0
  %v1080 = vadd.f32 %v993, %v1079
  %v1081 = vpop.f32.mrf.mxu0
  %v1082 = vadd.f32 %v993, %v1081
  %v1083 = vpop.f32.mrf.mxu0
  %v1084 = vpop.f32.mrf.mxu0
  %1085 = vdwg.mxu0
  %v1086 = vmax.f32 %v1039, 0.0
  %v1087 = vmax.f32 %v1041, 0.0
  %v1088 = vmax.f32 %v1080, 0.0
  %v1089 = vmax.f32 %v1082, 0.0
  %1090 = vset.pattern.permute.xlu0 4
  %1091 = vperm.xlu0 %1090, %v30
  %v1092 = vpop.permute.xlu0 %1091
  %v1094 = vmul.f32 %v1086, %v1092
  %v1095 = vmul.f32 %v1087, %v1092
  %v1096 = vmul.f32 %v1088, %v1092
  %v1097 = vmul.f32 %v1089, %v1092
  %1098 = vset.pattern.permute.xlu0 5
  %1099 = vperm.xlu0 %1098, %v30
  %v1100 = vpop.permute.xlu0 %1099
  %v1102 = vadd.f32 %v1094, %v1100
  %v1103 = vadd.f32 %v1095, %v1100
  %v1104 = vadd.f32 %v1096, %v1100
  %v1105 = vadd.f32 %v1097, %v1100
  %1106 = vst [vmem:[%s5] sm:$0xff] %v1102
  %1107 = vst [vmem:[%s5 + $0x8] sm:$0xff] %v1103
  %1108 = vst [vmem:[%s5 + $0x10] sm:$0xff] %v1104
  %1109 = vst [vmem:[%s5 + $0x18] sm:$0xff] %v1105
  // Predicated region
  $region22: #{decoder_layer2_forward.1} parent=0 // pred_check
    _
  $region23: #{decoder_layer2_forward.1} parent=0 // pred_check_branch
    %1111 = sbr.rel (0) target = $region25
  $region24: #{decoder_layer2_forward.1} parent=0 // pred_region
    _
  $region25: #{decoder_layer2_forward.1} parent=0 // pred_fallthru
    _
  // Predicated region
  $region26: #{decoder_layer2_forward.1} parent=0 // pred_check
    _
  $region27: #{decoder_layer2_forward.1} parent=0 // pred_check_branch
    %1113 = sbr.rel (0) target = $region29
  $region28: #{decoder_layer2_forward.1} parent=0 // pred_region
    _
  $region29: #{decoder_layer2_forward.1} parent=0 // pred_fallthru
    _

</llo_original>
